<compile_context>
chip_gen: v6e
topology: v6e:2x2x1
jax: 0.10.0
libtpu: 0.0.40
codegen_flags: <defaults>
</compile_context>

<pallas_src>
import functools
import math

import jax
import jax.numpy as jnp
from jax.experimental import pallas as pl
from jax.experimental.pallas import tpu as pltpu

_LN2 = math.log(2.0)


def _tuplemax_tile_kernel(logits_ref, idx_ref, out_ref, *, m, tile_n, n_valid,
                          mode, mask_tail):
    """Tuplemax loss for one (tile_n, m) tile of batch rows."""
    x = logits_ref[...].astype(jnp.float32)              # (tile_n, m), upcast in-kernel
    idx = idx_ref[...]                                    # (tile_n, 1) int32

    # One-hot of the true class via lane-wise compare against an iota.
    cols = jax.lax.broadcasted_iota(jnp.int32, (tile_n, m), 1)
    is_true = cols == idx                                 # (tile_n, m) bool

    # True-class logit per row (exactly one selected column per valid row).
    t = jnp.sum(jnp.where(is_true, x, 0.0), axis=-1, keepdims=True)    # (tile_n, 1)

    # Pairwise logsumexp(x_ij, t_i): one exp + one log per element.
    d = x - t
    lse = jnp.maximum(x, t) + jnp.log(1.0 + jnp.exp(-jnp.abs(d)))      # (tile_n, m)

    # sum_{j != t_i} lse_ij = sum_j lse_ij - (t_i + ln 2)  =>
    # loss_i = (sum_j lse_ij - m * t_i - ln 2) / (m - 1)   (no second select needed)
    s = jnp.sum(lse, axis=-1, keepdims=True)                           # (tile_n, 1)
    loss = (s - jnp.float32(m) * t - _LN2) * jnp.float32(1.0 / (m - 1))

    if mode == "mean":
        if mask_tail:
            # Ragged last tile: rows past the true batch size hold garbage; zero them.
            row0 = pl.program_id(0) * tile_n
            rows = row0 + jax.lax.broadcasted_iota(jnp.int32, (tile_n, 1), 0)
            loss = jnp.where(rows < n_valid, loss, 0.0)
        # One partial sum per tile; the mean is finished in the JAX wrapper.
        out_ref[...] = jnp.sum(loss, axis=0, keepdims=True)[None]      # (1, 1, 1)
    else:
        out_ref[...] = loss                                            # (tile_n, 1)


def _choose_tile_n(n_rows, m, in_itemsize):
    """Largest sublane-aligned row tile whose working set stays inside scoped VMEM."""
    # double-buffered input tile + ~4 live f32 temporaries of the same (tile, m) shape.
    budget = 20 * 1024 * 1024
    tile = 512
    while tile > 8 and tile * m * (2 * in_itemsize + 16) > budget:
        tile //= 2
    tile = min(tile, (n_rows // 8) * 8)      # multiple of 8, never larger than the array
    return max(tile, 8)


def tuplemax_loss(logits, true_class_idx, reduction="mean"):
    """logits: [N, M] float (any float dtype, kept native in HBM);
    true_class_idx: [N] or [N, 1] integer class positions."""
    n, m = logits.shape
    if m < 2:
        raise ValueError(f"TuplemaxLoss needs at least 2 classes, got m={m}.")

    idx = jnp.asarray(true_class_idx).reshape(n, 1).astype(jnp.int32)
    n_valid = n

    # Tiny batches: pad rows up to the 8-sublane minimum (padded rows are masked
    # out of the mean and sliced off the per-sample output).
    if n < 8:
        logits = jnp.pad(logits, ((0, 8 - n), (0, 0)))
        idx = jnp.pad(idx, ((0, 8 - n), (0, 0)))
        n = 8

    tile_n = _choose_tile_n(n, m, jnp.dtype(logits.dtype).itemsize)
    num_tiles = pl.cdiv(n, tile_n)
    mode = "mean" if reduction == "mean" else "none"

    kernel = functools.partial(
        _tuplemax_tile_kernel,
        m=m, tile_n=tile_n, n_valid=n_valid, mode=mode,
        mask_tail=(num_tiles * tile_n != n_valid))

    if mode == "mean":
        # Per-tile partial sums -> negligible output traffic, no cross-tile accumulator.
        out_shape = jax.ShapeDtypeStruct((num_tiles, 1, 1), jnp.float32)
        out_spec = pl.BlockSpec((1, 1, 1), lambda i: (i, 0, 0))
    else:
        # TODO(synk): per-row losses are stored as a (tile_n, 1) column (lane-sparse);
        # a fully lane-dense (1, tile_n) layout needs a sublane->lane transpose that
        # has no cheap exact Pallas lowering here. Output bytes are ~1/M of the input
        # so this is a minor cost for realistic class counts.
        out_shape = jax.ShapeDtypeStruct((num_tiles * tile_n, 1), jnp.float32)
        out_spec = pl.BlockSpec((tile_n, 1), lambda i: (i, 0))

    result = pl.pallas_call(
        kernel,
        grid=(num_tiles,),
        in_specs=[
            pl.BlockSpec((tile_n, m), lambda i: (i, 0)),   # logits tile (native dtype)
            pl.BlockSpec((tile_n, 1), lambda i: (i, 0)),   # true-class indices
        ],
        out_specs=out_spec,
        out_shape=out_shape,
        compiler_params=pltpu.CompilerParams(
            dimension_semantics=("parallel",),
            vmem_limit_bytes=32 * 1024 * 1024,
        ),
    )(logits, idx)

    if mode == "mean":
        return jnp.sum(result) / jnp.float32(n_valid)
    return result[:n_valid, 0]


def _reference(logits_f32, idx):
    # Plain-JAX reference mirroring the PyTorch forward (f32 math).
    n, m = logits_f32.shape
    t = logits_f32[jnp.arange(n), idx]                        # (N,)
    lse = jnp.logaddexp(logits_f32, t[:, None])               # (N, M)
    one_hot = jax.nn.one_hot(idx, m, dtype=jnp.float32)       # (N, M)
    false_sum = jnp.sum(lse * (1.0 - one_hot), axis=-1)       # (N,)
    loss = false_sum / (m - 1) - t
    return jnp.mean(loss), loss


if __name__ == "__main__":
    key = jax.random.PRNGKey(0)
    # Case 1: small f32 batch.  Case 2: bf16 logits (native-dtype path) with a
    # batch size that is not a multiple of the tile (exercises the ragged tail).
    cases = [((8, 16), jnp.float32), ((37, 12), jnp.bfloat16)]

    for (n, m), dtype in cases:
        key, k_logits, k_idx = jax.random.split(key, 3)
        logits = (jax.random.normal(k_logits, (n, m), dtype=jnp.float32) * 3.0).astype(dtype)
        true_idx = jax.random.randint(k_idx, (n,), 0, m, dtype=jnp.int32)

        mean_loss = jax.block_until_ready(tuplemax_loss(logits, true_idx, reduction="mean"))
        per_sample = jax.block_until_ready(tuplemax_loss(logits, true_idx, reduction="none"))

        ref_mean, ref_per = _reference(logits.astype(jnp.float32), true_idx)
        assert jnp.allclose(mean_loss, ref_mean, atol=1e-5, rtol=1e-5), (dtype, mean_loss, ref_mean)
        assert jnp.allclose(per_sample, ref_per, atol=1e-5, rtol=1e-5), (dtype, per_sample, ref_per)

    print("KERNEL_OK")
</pallas_src>

<mosaic_0001>
module attributes {stable_mosaic.version = 11 : i64} {
  func.func @_tuplemax_tile_kernel(%arg0: i32, %arg1: memref<8x16xf32, #tpu.memory_space<vmem>>, %arg2: memref<8x1xi32, #tpu.memory_space<vmem>>, %arg3: memref<1x1x1xf32, #tpu.memory_space<vmem>>) attributes {dimension_semantics = [#tpu.dimension_semantics<parallel>], iteration_bounds = array<i64: 1>, scalar_prefetch = 0 : i64, scratch_operands = 0 : i64, tpu.core_type = #tpu.core_type<tc>, window_params = [{transform_indices = @transform_0, window_bounds = array<i64: 8, 16>}, {transform_indices = @transform_1, window_bounds = array<i64: 8, 1>}, {transform_indices = @transform_2, window_bounds = array<i64: 1, 1, 1>}]} {
    %c0 = arith.constant 0 : index
    %c0_0 = arith.constant 0 : index
    %0 = vector.load %arg1[%c0, %c0_0] : memref<8x16xf32, #tpu.memory_space<vmem>>, vector<8x16xf32>
    %c0_1 = arith.constant 0 : index
    %c0_2 = arith.constant 0 : index
    %1 = vector.load %arg2[%c0_1, %c0_2] : memref<8x1xi32, #tpu.memory_space<vmem>>, vector<8x1xi32>
    %2 = tpu.iota {dimensions = array<i32: 1>} : vector<8x16xi32>
    %3 = vector.broadcast %1 : vector<8x1xi32> to vector<8x16xi32>
    %4 = arith.cmpi eq, %2, %3 : vector<8x16xi32>
    %cst = arith.constant 0.000000e+00 : f32
    %5 = vector.broadcast %cst : f32 to vector<8x16xf32>
    %6 = arith.select %4, %0, %5 : vector<8x16xi1>, vector<8x16xf32>
    %cst_3 = arith.constant dense<0.000000e+00> : vector<8xf32>
    %7 = vector.multi_reduction <add>, %6, %cst_3 [1] : vector<8x16xf32> to vector<8xf32>
    %8 = vector.shape_cast %7 : vector<8xf32> to vector<8x1xf32>
    %9 = vector.broadcast %8 : vector<8x1xf32> to vector<8x16xf32>
    %10 = arith.subf %0, %9 : vector<8x16xf32>
    %11 = vector.broadcast %8 : vector<8x1xf32> to vector<8x16xf32>
    %12 = arith.maximumf %0, %11 : vector<8x16xf32>
    %13 = math.absf %10 : vector<8x16xf32>
    %cst_4 = arith.constant 0.000000e+00 : f32
    %14 = vector.broadcast %cst_4 : f32 to vector<8x16xf32>
    %15 = arith.subf %14, %13 : vector<8x16xf32>
    %16 = math.exp %15 : vector<8x16xf32>
    %cst_5 = arith.constant 1.000000e+00 : f32
    %17 = vector.broadcast %cst_5 : f32 to vector<8x16xf32>
    %18 = arith.addf %17, %16 : vector<8x16xf32>
    %19 = math.log %18 : vector<8x16xf32>
    %20 = arith.addf %12, %19 : vector<8x16xf32>
    %cst_6 = arith.constant dense<0.000000e+00> : vector<8xf32>
    %21 = vector.multi_reduction <add>, %20, %cst_6 [1] : vector<8x16xf32> to vector<8xf32>
    %22 = vector.shape_cast %21 : vector<8xf32> to vector<8x1xf32>
    %cst_7 = arith.constant 1.600000e+01 : f32
    %23 = vector.broadcast %cst_7 : f32 to vector<8x1xf32>
    %24 = arith.mulf %23, %8 : vector<8x1xf32>
    %25 = arith.subf %22, %24 : vector<8x1xf32>
    %cst_8 = arith.constant 0.693147182 : f32
    %26 = vector.broadcast %cst_8 : f32 to vector<8x1xf32>
    %27 = arith.subf %25, %26 : vector<8x1xf32>
    %cst_9 = arith.constant 0.0666666701 : f32
    %28 = vector.broadcast %cst_9 : f32 to vector<8x1xf32>
    %29 = arith.mulf %27, %28 : vector<8x1xf32>
    %cst_10 = arith.constant dense<0.000000e+00> : vector<1xf32>
    %30 = vector.multi_reduction <add>, %29, %cst_10 [0] : vector<8x1xf32> to vector<1xf32>
    %31 = vector.shape_cast %30 : vector<1xf32> to vector<1x1xf32>
    %32 = vector.shape_cast %31 : vector<1x1xf32> to vector<1x1x1xf32>
    %c0_11 = arith.constant 0 : index
    %c0_12 = arith.constant 0 : index
    %c0_13 = arith.constant 0 : index
    %33 = vector.load %arg3[%c0_11, %c0_12, %c0_13] : memref<1x1x1xf32, #tpu.memory_space<vmem>>, vector<1x1x1xf32>
    tpu.vector_store %arg3[%c0_11, %c0_12, %c0_13], %32 {strides = array<i32>} : memref<1x1x1xf32, #tpu.memory_space<vmem>>, vector<1x1x1xf32>,
    return
  }
  func.func @transform_0(%arg0: i32) -> (i32, i32) {
    %c0_i32 = arith.constant 0 : i32
    %c0_i32_0 = arith.constant 0 : i32
    return %arg0, %c0_i32 : i32, i32
  }
  func.func @transform_1(%arg0: i32) -> (i32, i32) {
    %c0_i32 = arith.constant 0 : i32
    %c0_i32_0 = arith.constant 0 : i32
    return %arg0, %c0_i32 : i32, i32
  }
  func.func @transform_2(%arg0: i32) -> (i32, i32, i32) {
    %c0_i32 = arith.constant 0 : i32
    %c0_i32_0 = arith.constant 0 : i32
    %c0_i32_1 = arith.constant 0 : i32
    return %arg0, %c0_i32, %c0_i32_0 : i32, i32, i32
  }
}

</mosaic_0001>

<llo_original>
// kernel: tpu_custom_call.1
$region0: #{tpu_custom_call.1}
  #allocation0 [shape = 'u32[]', space=smem, size = 0x4, offset = 0x4, fixed_abs, tag = 'smem constant byte address 0x4 - core index']
  #allocation1 [shape = 'u32[144,128]{1,0:T(1,128)}', space=vmem, size = 0x12000, scoped, tag = 'internal scratch']
  %s0 = inlined_call_operand.vmem [shape: f32[8,16], index: 0, kind: input, shape index: {}]
  %s1 = inlined_call_operand.vmem [shape: s32[8,1], index: 1, kind: input, shape index: {}]
  %s2 = inlined_call_operand.hbm [shape: f32[1,1,1], index: 2, kind: output, shape index: {}]
  %s3 = sld [smem:[#allocation0]]
  $region18: #{tpu_custom_call.1} parent=0
    _
  %s5 = ssub.s32 1, %s3
  %s6 = scalar_select 0, %s5, %s3
  $region1: #{tpu_custom_call.1} parent=0
    #allocation2 [shape = 'u8[512]{0}', space=vmem, size = 0x400, scoped, tag = 'output window, operand 0, single buffered']
    #allocation3 [shape = 's32[1]{0}', space=sflag, size = 0x4, scoped, tag = 'scoped memory for tpu_custom_call.1']
    %7 = vsyncpa [#allocation3], 0
    // Predicated region
    $region2: #{tpu_custom_call.1} parent=1 // pred_check
      _
    $region3: #{tpu_custom_call.1} parent=1 // pred_check_branch
      %9 = sbr.rel (0) target = $region5
    $region4: #{tpu_custom_call.1} parent=1 // pred_region
      _
    $region5: #{tpu_custom_call.1} parent=1 // pred_fallthru
      _
    // Predicated region
    $region6: #{tpu_custom_call.1} parent=1 // pred_check
      _
    $region7: #{tpu_custom_call.1} parent=1 // pred_check_branch
      %11 = sbr.rel (0) target = $region9
    $region8: #{tpu_custom_call.1} parent=1 // pred_region
      _
    $region9: #{tpu_custom_call.1} parent=1 // pred_fallthru
      _
    %v12 = vld [vmem:[%s0] sm:$0xff]
    %v13 = vld [vmem:[%s1] sm:$0xff]
    %v14 = vlaneseq
    %v15 = vand.u32 %v14, 127
    %16 = vset.pattern.permute.xlu0 0
    %17 = vperm.xlu0 %16, %v13
    %v18 = vpop.permute.xlu0 %17
    %vm19 = vcmp.eq.s32.totalorder %v15, %v18
    %v20 = vsel %vm19, %v12, 0.0
    %vm21 = vcmask 130048
    %v22 = vsel %vm21, %v20, 0.0
    %23 = vadd.xlane.f32.xlu0 %v22
    %v24 = vpop.xlane.xlu0 %23
    %v25 = vsub.f32 %v12, %v24
    %v26 = vmax.f32 %v12, %v24
    %v27 = vand.u32 2147483647, %v25
    %v28 = vsub.f32 0.0, %v27
    %v29 = vmul.f32 %v28, 1.442695
    %v30 = vpow.pop %v29
    %v31 = vadd.f32 %v30, 1.0
    %v32 = vlog2.pop %v31
    %v33 = vmul.f32 %v32, 0.6931472
    %v34 = vadd.f32 %v26, %v33
    %v35 = vsel %vm21, %v34, 0.0
    %36 = vadd.xlane.f32.xlu0 %v35
    %v37 = vpop.xlane.xlu0 %36
    %v38 = vmul.f32 %v24, 16.0
    %v39 = vsub.f32 %v37, %v38
    %v40 = vsub.f32 %v39, 0.6931472
    %v41 = vmul.f32 %v40, 0.06666667
    %v42 = vrot.slane %v41, 4
    %v43 = vadd.f32 %v41, %v42
    %v44 = vrot.slane %v43, 2
    %v45 = vadd.f32 %v43, %v44
    %v46 = vrot.slane %v45, 1
    %v47 = vadd.f32 %v45, %v46
    %vm48 = vcmask 0
    %49 = vst.msk [vmem:[#allocation2] sm:$0x1] %vm48, %v47
    // Predicated region
    $region10: #{tpu_custom_call.1} parent=1 // pred_check
      _
    $region11: #{tpu_custom_call.1} parent=1 // pred_check_branch
      %51 = sbr.rel (0) target = $region13
    $region12: #{tpu_custom_call.1} parent=1 // pred_region
      %s53 = ssub.s32 16, 16
      %54 = vsyncadd [#allocation3], %s53
      %s56 = sshll.u32 [#allocation2], 4
      %s57 = int_to_ptr.vmem [resolvable:$true] %s56
      %59 = dma.vmem_to_hbm [thread:$0]  %s57, 16, %s2, [#allocation3]
    $region13: #{tpu_custom_call.1} parent=1 // pred_fallthru
      _
    // Predicated region
    $region14: #{tpu_custom_call.1} parent=1 // pred_check
      _
    $region15: #{tpu_custom_call.1} parent=1 // pred_check_branch
      %61 = sbr.rel (0) target = $region17
    $region16: #{tpu_custom_call.1} parent=1 // pred_region
      %62 = dma.done [#allocation3], 16
    $region17: #{tpu_custom_call.1} parent=1 // pred_fallthru
      _
    %63 = vsyncpa [#allocation3], 1

</llo_original>
